<compile_context>
chip_gen: v5e
topology: v5e:2x2
jax: 0.10.0
libtpu: 0.0.40
codegen_flags: <defaults>
</compile_context>

<pallas_src>
import functools

import jax
import jax.numpy as jnp
from jax.experimental import pallas as pl
from jax.experimental.pallas import tpu as pltpu


_LANE = 128          # lane alignment of the slab's last dim
_SUBLANE = 32        # covers u8/i8 (32) and f32 (8) sublane tiling
_TILE_ROWS = 512     # default rows per grid step
_MAX_COLS = 4096     # default lane width of the flattened code slab


def _round_up(v: int, m: int) -> int:
    return -(-v // m) * m


def _dequant_kernel(code_ref, o_ref, *, inv_step: float):
    # code_ref: (tr, cols) uint8 / int32 / float32 "num" plane
    #           (num = sum_i bit_i * 2**(B-1-i), computed in the wrapper prepass)
    # o_ref   : (tr, cols) float32 (or bf16) dequantized values
    num = code_ref[...].astype(jnp.float32)
    o_ref[...] = ((num + 0.5) * inv_step).astype(o_ref.dtype)


def dequantization_layer(x: jax.Array, B: int, *,
                         assume_binary_bits: bool = True,
                         out_dtype=jnp.float32,
                         tile_rows: int | None = None,
                         lane_width: int | None = None) -> jax.Array:
    """x: [batch, N*B] float bits -> [batch, N] dequantized values."""
    batch, nb = x.shape
    assert nb % B == 0, "feature dim must be divisible by B"
    N = nb // B
    total = batch * N

    # ---- prepass: fold the B bits of each group into one code/num value ----
    # One fused XLA pass over the natural contiguous [batch, N, B] layout:
    # reads 4*B bytes / output, writes 1 (u8) or 4 (f32) bytes / output.
    # No transpose / relayout.
    weights = jnp.asarray([2.0 ** (B - 1 - i) for i in range(B)], jnp.float32)
    num = jnp.sum(x.reshape(batch, N, B).astype(jnp.float32) * weights, axis=-1)
    if assume_binary_bits:
        # Exact when bits are in {0, 1}; codes fit uint8 for B <= 8.
        code_dtype = jnp.uint8 if B <= 8 else jnp.int32
        plane = num.astype(code_dtype)
    else:
        # Exact float semantics for arbitrary (relaxed / STE) bit values.
        plane = num

    # ---- flatten + pad into a lane-dense (rows, cols) slab ----
    if lane_width is not None:
        cols = _round_up(max(int(lane_width), _LANE), _LANE)
    else:
        cols = min(_MAX_COLS, _round_up(total, _LANE))
    rows = pl.cdiv(total, cols)
    padded = rows * cols

    flat = plane.reshape(total)
    if padded != total:
        flat = jnp.pad(flat, (0, padded - total))   # tiny (< cols elements)
    slab = flat.reshape(rows, cols)                 # contiguity-preserving

    tr = _TILE_ROWS if tile_rows is None else int(tile_rows)
    tr = min(tr, rows)
    if tr < rows:
        tr = max(_SUBLANE, (tr // _SUBLANE) * _SUBLANE)   # keep (8,128) rule happy
    grid = (pl.cdiv(rows, tr),)

    out = pl.pallas_call(
        functools.partial(_dequant_kernel, inv_step=float(2.0 ** (-B))),
        out_shape=jax.ShapeDtypeStruct((rows, cols), out_dtype),
        grid=grid,
        in_specs=[pl.BlockSpec((tr, cols), lambda i: (i, 0))],
        out_specs=pl.BlockSpec((tr, cols), lambda i: (i, 0)),
        compiler_params=pltpu.CompilerParams(
            dimension_semantics=("parallel",),
            vmem_limit_bytes=48 * 1024 * 1024),
    )(slab)

    out_flat = out.reshape(padded)
    if padded != total:
        out_flat = out_flat[:total]
    return out_flat.reshape(batch, N)


def _reference(x: jax.Array, B: int) -> jax.Array:
    # Pure-JAX reference mirroring the PyTorch Bit2Num / Dequantization forward.
    batch, nb = x.shape
    N = nb // B
    bits = x.astype(jnp.float32).reshape(batch, N, B)
    weights = jnp.array([2.0 ** (B - 1 - i) for i in range(B)], jnp.float32)
    num = jnp.sum(bits * weights, axis=-1)
    return (num + 0.5) / (2 ** B)


if __name__ == "__main__":
    B = 4
    key = jax.random.PRNGKey(0)

    cases = [
        (2, 32),     # module-implied tiny shape; total=64 -> padded lane-dense slab
        (16, 32),    # N < 128; flattening keeps stores 128-lane dense
        (64, 512),   # total=32768 -> cols=4096, rows=8 slab
    ]

    for batch, N in cases:
        key, sub = jax.random.split(key)
        x = jax.random.bernoulli(sub, p=0.5, shape=(batch, N * B)).astype(jnp.float32)
        ref = _reference(x, B)

        # default packed-uint8-code path
        out = jax.block_until_ready(jax.jit(lambda v: dequantization_layer(v, B))(x))
        assert out.shape == (batch, N)
        assert jnp.allclose(out, ref, atol=1e-7, rtol=0), (batch, N, "binary path")

        # exact-float path (arbitrary bit values allowed)
        out_f = jax.block_until_ready(
            jax.jit(lambda v: dequantization_layer(v, B, assume_binary_bits=False))(x))
        assert jnp.allclose(out_f, ref, atol=1e-7, rtol=0), (batch, N, "float path")

    # relaxed (non-binary) bits: the float path must still match the reference
    key, sub = jax.random.split(key)
    xr = jax.random.uniform(sub, shape=(8, 64 * B), dtype=jnp.float32)
    out_r = jax.block_until_ready(
        jax.jit(lambda v: dequantization_layer(v, B, assume_binary_bits=False))(xr))
    assert jnp.allclose(out_r, _reference(xr, B), atol=1e-6, rtol=1e-6)

    # multi-step grid with a remainder block (rows=80, tr=32 -> 3 steps)
    key, sub = jax.random.split(key)
    xm = jax.random.bernoulli(sub, p=0.5, shape=(40, 256 * B)).astype(jnp.float32)
    out_m = jax.block_until_ready(
        jax.jit(lambda v: dequantization_layer(v, B, tile_rows=32, lane_width=128))(xm))
    assert jnp.allclose(out_m, _reference(xm, B), atol=1e-7, rtol=0)

    print("KERNEL_OK")
</pallas_src>

<mosaic_0001>
module attributes {stable_mosaic.version = 11 : i64} {
  func.func @_dequant_kernel(%arg0: i32, %arg1: memref<1x128xi8, #tpu.memory_space<vmem>>, %arg2: memref<1x128xf32, #tpu.memory_space<vmem>>) attributes {dimension_semantics = [#tpu.dimension_semantics<parallel>], iteration_bounds = array<i64: 1>, scalar_prefetch = 0 : i64, scratch_operands = 0 : i64, tpu.core_type = #tpu.core_type<tc>, window_params = [{transform_indices = @transform_0, window_bounds = array<i64: 1, 128>}, {transform_indices = @transform_1, window_bounds = array<i64: 1, 128>}]} {
    %c0 = arith.constant 0 : index
    %c0_0 = arith.constant 0 : index
    %0 = vector.load %arg1[%c0, %c0_0] : memref<1x128xi8, #tpu.memory_space<vmem>>, vector<1x128xi8>
    %1 = arith.uitofp %0 : vector<1x128xi8> to vector<1x128xf32>
    %cst = arith.constant 5.000000e-01 : f32
    %2 = vector.broadcast %cst : f32 to vector<1x128xf32>
    %3 = arith.addf %1, %2 : vector<1x128xf32>
    %cst_1 = arith.constant 6.250000e-02 : f32
    %4 = vector.broadcast %cst_1 : f32 to vector<1x128xf32>
    %5 = arith.mulf %3, %4 : vector<1x128xf32>
    %c0_2 = arith.constant 0 : index
    %c0_3 = arith.constant 0 : index
    %6 = vector.load %arg2[%c0_2, %c0_3] : memref<1x128xf32, #tpu.memory_space<vmem>>, vector<1x128xf32>
    tpu.vector_store %arg2[%c0_2, %c0_3], %5 {strides = array<i32>} : memref<1x128xf32, #tpu.memory_space<vmem>>, vector<1x128xf32>,
    return
  }
  func.func @transform_0(%arg0: i32) -> (i32, i32) {
    %c0_i32 = arith.constant 0 : i32
    %c0_i32_0 = arith.constant 0 : i32
    return %arg0, %c0_i32 : i32, i32
  }
  func.func @transform_1(%arg0: i32) -> (i32, i32) {
    %c0_i32 = arith.constant 0 : i32
    %c0_i32_0 = arith.constant 0 : i32
    return %arg0, %c0_i32 : i32, i32
  }
}

</mosaic_0001>

<llo_original>
// kernel: _lambda_.1
$region0: #{_lambda_.1}
  #allocation0 [shape = 'u32[]', space=smem, size = 0x4, offset = 0x4, fixed_abs, tag = 'smem constant byte address 0x4 - core index']
  #allocation1 [shape = 'u32[72,128]{1,0:T(1,128)}', space=vmem, size = 0x9000, scoped, tag = 'internal scratch']
  %s0 = inlined_call_operand.vmem [shape: u8[1,128], index: 0, kind: input, shape index: {}]
  %s1 = inlined_call_operand.vmem [shape: f32[1,128], index: 1, kind: output, shape index: {}]
  %s2 = sld [smem:[#allocation0]]
  $region14: #{_lambda_.1} parent=0
    _
  %s4 = ssub.s32 1, %s2
  %s5 = scalar_select 0, %s4, %s2
  // Predicated region
  $region2: #{_lambda_.1} parent=0 // pred_check
    _
  $region3: #{_lambda_.1} parent=0 // pred_check_branch
    %7 = sbr.rel (0) target = $region5
  $region4: #{_lambda_.1} parent=0 // pred_region
    _
  $region5: #{_lambda_.1} parent=0 // pred_fallthru
    _
  %v8 = vld [vmem:[%s0] sm:$0x1]
  %v9 = vunpack.c.0.s8 %v8
  %v10 = vand.u32 %v9, 255
  %v11 = vcvt.s32.f32 %v10
  %v12 = vadd.f32 %v11, 0.5
  %v13 = vmul.f32 %v12, 0.0625
  %14 = vst [vmem:[%s1] sm:$0x1] %v13
  // Predicated region
  $region6: #{_lambda_.1} parent=0 // pred_check
    _
  $region7: #{_lambda_.1} parent=0 // pred_check_branch
    %16 = sbr.rel (0) target = $region9
  $region8: #{_lambda_.1} parent=0 // pred_region
    _
  $region9: #{_lambda_.1} parent=0 // pred_fallthru
    _
  // Predicated region
  $region10: #{_lambda_.1} parent=0 // pred_check
    _
  $region11: #{_lambda_.1} parent=0 // pred_check_branch
    %18 = sbr.rel (0) target = $region13
  $region12: #{_lambda_.1} parent=0 // pred_region
    _
  $region13: #{_lambda_.1} parent=0 // pred_fallthru
    _

</llo_original>
